<compile_context>
chip_gen: v6e
topology: v6e:2x2x1
jax: 0.10.0
libtpu: 0.0.40
codegen_flags: <defaults>
</compile_context>

<pallas_src>
import functools

import jax
import jax.numpy as jnp
import numpy as np
from jax.experimental import pallas as pl
from jax.experimental.pallas import tpu as pltpu


# -----------------------------------------------------------------------------
# Static model configuration (toy-sized SSD head)
# -----------------------------------------------------------------------------
NUM_CLASSES = 6
CENTER_VARIANCE = 0.1
SIZE_VARIANCE = 0.2
IN_CHANNELS = [8, 8, 8]
FEAT_SIZES = [(8, 8), (4, 4), (2, 2)]
BOXES_PER_LOC = [4, 6, 4]

LANE = 128
K_IM2COL = 9 * IN_CHANNELS[0]                     # 72 (identical for all levels)
K_PAD = LANE                                      # pad K to one full lane group

# Column layout of the fused weight matrix: per level [cls | reg], concatenated.
COL_CLS, COL_REG = [], []
_c = 0
for _bpl in BOXES_PER_LOC:
    COL_CLS.append(_c); _c += _bpl * NUM_CLASSES
    COL_REG.append(_c); _c += _bpl * 4
N_TOTAL = _c                                      # 140
N_PAD = ((N_TOTAL + LANE - 1) // LANE) * LANE     # 256 -> lane-dense output


# -----------------------------------------------------------------------------
# Pallas kernel 1: one matmul + bias for ALL conv heads of ALL levels
# -----------------------------------------------------------------------------
def _fused_heads_kernel(a_ref, w_ref, b_ref, o_ref):
    # a: [M, K_PAD], w: [K_PAD, N_PAD], b: [1, N_PAD] -> o: [M, N_PAD]
    acc = jnp.dot(a_ref[...], w_ref[...], preferred_element_type=jnp.float32)
    o_ref[...] = (acc + b_ref[...]).astype(o_ref.dtype)


def _fused_heads_matmul(a, w, b):
    M = a.shape[0]
    return pl.pallas_call(
        _fused_heads_kernel,
        out_shape=jax.ShapeDtypeStruct((M, N_PAD), jnp.float32),
        grid=(1,),
        in_specs=[
            pl.BlockSpec((M, K_PAD), lambda i: (0, 0)),
            pl.BlockSpec((K_PAD, N_PAD), lambda i: (0, 0)),
            pl.BlockSpec((1, N_PAD), lambda i: (0, 0)),
        ],
        out_specs=pl.BlockSpec((M, N_PAD), lambda i: (0, 0)),
        compiler_params=pltpu.CompilerParams(
            dimension_semantics=("arbitrary",)),
    )(a, w, b)


def _im2col_3x3(x_nhwc):
    """3x3 SAME-conv patch extraction (XLA glue). Returns [B*H*W, 9*C]."""
    B, H, W, C = x_nhwc.shape
    xp = jnp.pad(x_nhwc, ((0, 0), (1, 1), (1, 1), (0, 0)))
    patches = []
    for dy in range(3):
        for dx in range(3):
            patches.append(xp[:, dy:dy + H, dx:dx + W, :])
    return jnp.concatenate(patches, axis=-1).reshape(B * H * W, 9 * C)


def fuse_params(params):
    """Concatenate every head's OIHW weights/biases into one [K_PAD, N_PAD] matmul."""
    w_cols, b_cols = [], []
    for p, bpl in zip(params, BOXES_PER_LOC):
        # (O, I, kh, kw) -> (kh, kw, I, O) -> rows ordered (dy, dx, cin),
        # matching the im2col patch concatenation order.
        w_cols.append(jnp.transpose(p["cls_w"], (2, 3, 1, 0))
                      .reshape(K_IM2COL, bpl * NUM_CLASSES))
        w_cols.append(jnp.transpose(p["reg_w"], (2, 3, 1, 0))
                      .reshape(K_IM2COL, bpl * 4))
        b_cols.append(p["cls_b"])
        b_cols.append(p["reg_b"])
    w = jnp.concatenate(w_cols, axis=1)                     # [72, 140]
    b = jnp.concatenate(b_cols, axis=0)                     # [140]
    w = jnp.pad(w, ((0, K_PAD - K_IM2COL), (0, N_PAD - N_TOTAL)))
    b = jnp.pad(b, (0, N_PAD - N_TOTAL)).reshape(1, N_PAD)
    # NOTE: casting (a, w) to bf16 would raise MXU throughput on v5e/v6e, but
    # at these sizes the workload is launch-bound; f32 keeps exact reference
    # semantics, so we stay in f32.
    return w, b


# -----------------------------------------------------------------------------
# Pallas kernel 2: lane-dense softmax + box decode + center->corner
# (anchors on the lane axis, classes/coords on the sublane axis)
# -----------------------------------------------------------------------------
def _decode_kernel(cls_ref, loc_ref, pri_ref, scores_ref, boxes_ref,
                   *, center_variance, size_variance):
    logits = cls_ref[...]                                    # [C, T]
    m = jnp.max(logits, axis=0, keepdims=True)               # [1, T]
    e = jnp.exp(logits - m)
    scores_ref[...] = e / jnp.sum(e, axis=0, keepdims=True)

    loc = loc_ref[...]                                       # [4, T] rows: dx,dy,dw,dh
    pri = pri_ref[...]                                       # [4, T] rows: cx,cy,w,h
    cxcy = loc[0:2] * center_variance * pri[2:4] + pri[0:2]  # [2, T]
    wh = jnp.exp(loc[2:4] * size_variance) * pri[2:4]        # [2, T]
    boxes_ref[pl.ds(0, 2), :] = cxcy - 0.5 * wh              # x1, y1
    boxes_ref[pl.ds(2, 2), :] = cxcy + 0.5 * wh              # x2, y2


def decode_pallas(cls_logits, bbox_pred, priors, center_variance, size_variance):
    B, A, C = cls_logits.shape
    R = B * A
    R_pad = pl.cdiv(R, LANE) * LANE

    # Lane-dense transposed layout [rows, anchors]; zero-pad the anchor axis to
    # a multiple of 128 (padding is harmless: softmax/decode of zeros is finite
    # and the pad is sliced off afterwards).
    cls_t = jnp.pad(cls_logits.reshape(R, C).T, ((0, 0), (0, R_pad - R)))
    loc_t = jnp.pad(bbox_pred.reshape(R, 4).T, ((0, 0), (0, R_pad - R)))
    pri_t = jnp.pad(jnp.tile(priors, (B, 1)).T, ((0, 0), (0, R_pad - R)))

    # Split the anchor (lane) axis into 2 "parallel" tiles so v7x's second
    # TensorCore is used; on v5e/v6e the extra step costs ~0.35 us.
    n_tiles = 2 if R_pad % (2 * LANE) == 0 else 1
    tile = R_pad // n_tiles

    kernel = functools.partial(_decode_kernel,
                               center_variance=center_variance,
                               size_variance=size_variance)
    scores_t, boxes_t = pl.pallas_call(
        kernel,
        out_shape=(jax.ShapeDtypeStruct((C, R_pad), jnp.float32),
                   jax.ShapeDtypeStruct((4, R_pad), jnp.float32)),
        grid=(n_tiles,),
        in_specs=[
            pl.BlockSpec((C, tile), lambda i: (0, i)),
            pl.BlockSpec((4, tile), lambda i: (0, i)),
            pl.BlockSpec((4, tile), lambda i: (0, i)),
        ],
        out_specs=(
            pl.BlockSpec((C, tile), lambda i: (0, i)),
            pl.BlockSpec((4, tile), lambda i: (0, i)),
        ),
        compiler_params=pltpu.CompilerParams(
            dimension_semantics=("parallel",)),
    )(cls_t, loc_t, pri_t)

    scores = scores_t[:, :R].T.reshape(B, A, C)
    boxes = boxes_t[:, :R].T.reshape(B, A, 4)
    return scores, boxes


# -----------------------------------------------------------------------------
# SSDBoxHead forward (eval path)
# -----------------------------------------------------------------------------
def ssd_box_head_forward(features_nchw, fused_w, fused_b, priors):
    """features_nchw: list of [B, C, H, W]. Returns (scores, corner boxes)."""
    B = features_nchw[0].shape[0]

    # --- all conv heads of all levels in ONE Pallas matmul ------------------
    rows = [_im2col_3x3(jnp.transpose(x, (0, 2, 3, 1))) for x in features_nchw]
    a = jnp.concatenate(rows, axis=0)                        # [M, 72]
    a = jnp.pad(a, ((0, 0), (0, K_PAD - K_IM2COL)))          # [M, 128]
    y = _fused_heads_matmul(a, fused_w, fused_b)             # [M, 256]

    # --- split rows/columns back into per-level cls & reg predictions -------
    cls_list, reg_list = [], []
    row_off = 0
    for (H, W), bpl, ccol, rcol in zip(FEAT_SIZES, BOXES_PER_LOC, COL_CLS, COL_REG):
        n_rows = B * H * W
        yl = y[row_off:row_off + n_rows]
        cls_list.append(yl[:, ccol:ccol + bpl * NUM_CLASSES]
                        .reshape(B, H * W * bpl, NUM_CLASSES))
        reg_list.append(yl[:, rcol:rcol + bpl * 4].reshape(B, H * W * bpl, 4))
        row_off += n_rows
    cls_logits = jnp.concatenate(cls_list, axis=1)           # [B, A, NC]
    bbox_pred = jnp.concatenate(reg_list, axis=1)            # [B, A, 4]

    # --- softmax + prior decode + center->corner (one Pallas call) ----------
    scores, boxes = decode_pallas(cls_logits, bbox_pred, priors,
                                  CENTER_VARIANCE, SIZE_VARIANCE)
    # TODO(synk): PostProcessor (NMS) not implemented; return raw detections.
    return scores, boxes


# -----------------------------------------------------------------------------
# Deterministic parameter / prior construction
# -----------------------------------------------------------------------------
def make_params(key):
    params = []
    for cin, bpl in zip(IN_CHANNELS, BOXES_PER_LOC):
        key, k1, k2 = jax.random.split(key, 3)
        params.append(dict(
            cls_w=0.05 * jax.random.normal(k1, (bpl * NUM_CLASSES, cin, 3, 3), jnp.float32),
            cls_b=jnp.zeros((bpl * NUM_CLASSES,), jnp.float32),
            reg_w=0.05 * jax.random.normal(k2, (bpl * 4, cin, 3, 3), jnp.float32),
            reg_b=jnp.zeros((bpl * 4,), jnp.float32),
        ))
    return params


def make_priors():
    pri = []
    for (H, W), bpl in zip(FEAT_SIZES, BOXES_PER_LOC):
        for i in range(H):
            for j in range(W):
                cx, cy = (j + 0.5) / W, (i + 0.5) / H
                for k in range(bpl):
                    s = 0.1 + 0.1 * k
                    pri.append([cx, cy, s, s])
    return jnp.asarray(pri, dtype=jnp.float32)


# -----------------------------------------------------------------------------
# Pure-JAX reference for correctness check
# -----------------------------------------------------------------------------
def reference_forward(features_nchw, params, priors):
    cls_list, reg_list = [], []
    B = features_nchw[0].shape[0]
    for x, p in zip(features_nchw, params):
        def conv(x, w, b):
            y = jax.lax.conv_general_dilated(
                x, w, (1, 1), "SAME",
                dimension_numbers=("NCHW", "OIHW", "NCHW"))
            return y + b[None, :, None, None]
        cls = jnp.transpose(conv(x, p["cls_w"], p["cls_b"]), (0, 2, 3, 1))
        reg = jnp.transpose(conv(x, p["reg_w"], p["reg_b"]), (0, 2, 3, 1))
        cls_list.append(cls.reshape(B, -1, NUM_CLASSES))
        reg_list.append(reg.reshape(B, -1, 4))
    cls_logits = jnp.concatenate(cls_list, axis=1)
    bbox_pred = jnp.concatenate(reg_list, axis=1)
    scores = jax.nn.softmax(cls_logits, axis=2)
    pri = priors[None]
    cxcy = bbox_pred[..., :2] * CENTER_VARIANCE * pri[..., 2:] + pri[..., :2]
    wh = jnp.exp(bbox_pred[..., 2:] * SIZE_VARIANCE) * pri[..., 2:]
    boxes = jnp.concatenate([cxcy - 0.5 * wh, cxcy + 0.5 * wh], axis=-1)
    return scores, boxes


if __name__ == "__main__":
    key = jax.random.PRNGKey(0)
    key, kf = jax.random.split(key)
    B = 2
    feat_keys = jax.random.split(kf, len(FEAT_SIZES))
    features = [
        jax.random.normal(k, (B, c, h, w), jnp.float32)
        for k, c, (h, w) in zip(feat_keys, IN_CHANNELS, FEAT_SIZES)
    ]
    params = make_params(key)
    priors = make_priors()
    fused_w, fused_b = fuse_params(params)

    fwd = jax.jit(ssd_box_head_forward)
    scores, boxes = fwd(features, fused_w, fused_b, priors)
    scores = jax.block_until_ready(scores)
    boxes = jax.block_until_ready(boxes)

    ref_scores, ref_boxes = reference_forward(features, params, priors)
    np.testing.assert_allclose(np.asarray(scores), np.asarray(ref_scores),
                               rtol=1e-3, atol=1e-4)
    np.testing.assert_allclose(np.asarray(boxes), np.asarray(ref_boxes),
                               rtol=1e-3, atol=1e-4)

    print("KERNEL_OK")
</pallas_src>

<mosaic_0001>
module attributes {stable_mosaic.version = 11 : i64} {
  func.func @_fused_heads_kernel(%arg0: i32, %arg1: memref<168x128xf32, #tpu.memory_space<vmem>>, %arg2: memref<128x256xf32, #tpu.memory_space<vmem>>, %arg3: memref<1x256xf32, #tpu.memory_space<vmem>>, %arg4: memref<168x256xf32, #tpu.memory_space<vmem>>) attributes {dimension_semantics = [#tpu.dimension_semantics<arbitrary>], iteration_bounds = array<i64: 1>, scalar_prefetch = 0 : i64, scratch_operands = 0 : i64, tpu.core_type = #tpu.core_type<tc>, window_params = [{pipeline_mode = #tpu.pipeline_mode<synchronous>, transform_indices = @transform_0, window_bounds = array<i64: 168, 128>}, {pipeline_mode = #tpu.pipeline_mode<synchronous>, transform_indices = @transform_1, window_bounds = array<i64: 128, 256>}, {pipeline_mode = #tpu.pipeline_mode<synchronous>, transform_indices = @transform_2, window_bounds = array<i64: 1, 256>}, {pipeline_mode = #tpu.pipeline_mode<synchronous>, transform_indices = @transform_3, window_bounds = array<i64: 168, 256>}]} {
    %c0 = arith.constant 0 : index
    %c0_0 = arith.constant 0 : index
    %0 = vector.load %arg1[%c0, %c0_0] : memref<168x128xf32, #tpu.memory_space<vmem>>, vector<168x128xf32>
    %c0_1 = arith.constant 0 : index
    %c0_2 = arith.constant 0 : index
    %1 = vector.load %arg2[%c0_1, %c0_2] : memref<128x256xf32, #tpu.memory_space<vmem>>, vector<128x256xf32>
    %cst = arith.constant dense<0.000000e+00> : vector<168x256xf32>
    %2 = tpu.matmul %0, %1, %cst {dimension_numbers = #tpu.dot_dimension_numbers<[1], [0], [0], [1], [0, 0, 1, 1], [], []>} : vector<168x128xf32>, vector<128x256xf32>, vector<168x256xf32> -> vector<168x256xf32>
    %c0_3 = arith.constant 0 : index
    %c0_4 = arith.constant 0 : index
    %3 = vector.load %arg3[%c0_3, %c0_4] : memref<1x256xf32, #tpu.memory_space<vmem>>, vector<1x256xf32>
    %4 = vector.broadcast %3 : vector<1x256xf32> to vector<168x256xf32>
    %5 = arith.addf %2, %4 : vector<168x256xf32>
    %c0_5 = arith.constant 0 : index
    %c0_6 = arith.constant 0 : index
    %6 = vector.load %arg4[%c0_5, %c0_6] : memref<168x256xf32, #tpu.memory_space<vmem>>, vector<168x256xf32>
    tpu.vector_store %arg4[%c0_5, %c0_6], %5 {strides = array<i32>} : memref<168x256xf32, #tpu.memory_space<vmem>>, vector<168x256xf32>,
    return
  }
  func.func @transform_0(%arg0: i32) -> (i32, i32) {
    %c0_i32 = arith.constant 0 : i32
    %c0_i32_0 = arith.constant 0 : i32
    %c0_i32_1 = arith.constant 0 : i32
    return %c0_i32, %c0_i32_0 : i32, i32
  }
  func.func @transform_1(%arg0: i32) -> (i32, i32) {
    %c0_i32 = arith.constant 0 : i32
    %c0_i32_0 = arith.constant 0 : i32
    %c0_i32_1 = arith.constant 0 : i32
    return %c0_i32, %c0_i32_0 : i32, i32
  }
  func.func @transform_2(%arg0: i32) -> (i32, i32) {
    %c0_i32 = arith.constant 0 : i32
    %c0_i32_0 = arith.constant 0 : i32
    %c0_i32_1 = arith.constant 0 : i32
    return %c0_i32, %c0_i32_0 : i32, i32
  }
  func.func @transform_3(%arg0: i32) -> (i32, i32) {
    %c0_i32 = arith.constant 0 : i32
    %c0_i32_0 = arith.constant 0 : i32
    %c0_i32_1 = arith.constant 0 : i32
    return %c0_i32, %c0_i32_0 : i32, i32
  }
}

module attributes {stable_mosaic.version = 11 : i64} {
  func.func @_decode_kernel(%arg0: i32, %arg1: memref<6x384xf32, #tpu.memory_space<vmem>>, %arg2: memref<4x384xf32, #tpu.memory_space<vmem>>, %arg3: memref<4x384xf32, #tpu.memory_space<vmem>>, %arg4: memref<6x384xf32, #tpu.memory_space<vmem>>, %arg5: memref<4x384xf32, #tpu.memory_space<vmem>>) attributes {dimension_semantics = [#tpu.dimension_semantics<parallel>], iteration_bounds = array<i64: 2>, scalar_prefetch = 0 : i64, scratch_operands = 0 : i64, tpu.core_type = #tpu.core_type<tc>, window_params = [{transform_indices = @transform_0, window_bounds = array<i64: 6, 384>}, {transform_indices = @transform_1, window_bounds = array<i64: 4, 384>}, {transform_indices = @transform_2, window_bounds = array<i64: 4, 384>}, {transform_indices = @transform_3, window_bounds = array<i64: 6, 384>}, {transform_indices = @transform_4, window_bounds = array<i64: 4, 384>}]} {
    %c0 = arith.constant 0 : index
    %c0_0 = arith.constant 0 : index
    %0 = vector.load %arg1[%c0, %c0_0] : memref<6x384xf32, #tpu.memory_space<vmem>>, vector<6x384xf32>
    %cst = arith.constant dense<0xFF800000> : vector<384xf32>
    %1 = vector.multi_reduction <maximumf>, %0, %cst [0] : vector<6x384xf32> to vector<384xf32>
    %2 = vector.shape_cast %1 : vector<384xf32> to vector<1x384xf32>
    %3 = vector.broadcast %2 : vector<1x384xf32> to vector<6x384xf32>
    %4 = arith.subf %0, %3 : vector<6x384xf32>
    %5 = math.exp %4 : vector<6x384xf32>
    %cst_1 = arith.constant dense<0.000000e+00> : vector<384xf32>
    %6 = vector.multi_reduction <add>, %5, %cst_1 [0] : vector<6x384xf32> to vector<384xf32>
    %7 = vector.shape_cast %6 : vector<384xf32> to vector<1x384xf32>
    %8 = vector.broadcast %7 : vector<1x384xf32> to vector<6x384xf32>
    %9 = arith.divf %5, %8 : vector<6x384xf32>
    %c0_2 = arith.constant 0 : index
    %c0_3 = arith.constant 0 : index
    %10 = vector.load %arg4[%c0_2, %c0_3] : memref<6x384xf32, #tpu.memory_space<vmem>>, vector<6x384xf32>
    tpu.vector_store %arg4[%c0_2, %c0_3], %9 {strides = array<i32>} : memref<6x384xf32, #tpu.memory_space<vmem>>, vector<6x384xf32>,
    %c0_4 = arith.constant 0 : index
    %c0_5 = arith.constant 0 : index
    %11 = vector.load %arg2[%c0_4, %c0_5] : memref<4x384xf32, #tpu.memory_space<vmem>>, vector<4x384xf32>
    %c0_6 = arith.constant 0 : index
    %c0_7 = arith.constant 0 : index
    %12 = vector.load %arg3[%c0_6, %c0_7] : memref<4x384xf32, #tpu.memory_space<vmem>>, vector<4x384xf32>
    %13 = vector.extract_strided_slice %11 {offsets = [0, 0], sizes = [2, 384], strides = [1, 1]} : vector<4x384xf32> to vector<2x384xf32>
    %cst_8 = arith.constant 1.000000e-01 : f32
    %14 = vector.broadcast %cst_8 : f32 to vector<2x384xf32>
    %15 = arith.mulf %13, %14 : vector<2x384xf32>
    %16 = vector.extract_strided_slice %12 {offsets = [2, 0], sizes = [2, 384], strides = [1, 1]} : vector<4x384xf32> to vector<2x384xf32>
    %17 = arith.mulf %15, %16 : vector<2x384xf32>
    %18 = vector.extract_strided_slice %12 {offsets = [0, 0], sizes = [2, 384], strides = [1, 1]} : vector<4x384xf32> to vector<2x384xf32>
    %19 = arith.addf %17, %18 : vector<2x384xf32>
    %20 = vector.extract_strided_slice %11 {offsets = [2, 0], sizes = [2, 384], strides = [1, 1]} : vector<4x384xf32> to vector<2x384xf32>
    %cst_9 = arith.constant 2.000000e-01 : f32
    %21 = vector.broadcast %cst_9 : f32 to vector<2x384xf32>
    %22 = arith.mulf %20, %21 : vector<2x384xf32>
    %23 = math.exp %22 : vector<2x384xf32>
    %24 = vector.extract_strided_slice %12 {offsets = [2, 0], sizes = [2, 384], strides = [1, 1]} : vector<4x384xf32> to vector<2x384xf32>
    %25 = arith.mulf %23, %24 : vector<2x384xf32>
    %cst_10 = arith.constant 5.000000e-01 : f32
    %26 = vector.broadcast %cst_10 : f32 to vector<2x384xf32>
    %27 = arith.mulf %26, %25 : vector<2x384xf32>
    %28 = arith.subf %19, %27 : vector<2x384xf32>
    %c0_11 = arith.constant 0 : index
    %c0_12 = arith.constant 0 : index
    %29 = vector.load %arg5[%c0_11, %c0_12] : memref<4x384xf32, #tpu.memory_space<vmem>>, vector<2x384xf32>
    tpu.vector_store %arg5[%c0_11, %c0_12], %28 {strides = array<i32>} : memref<4x384xf32, #tpu.memory_space<vmem>>, vector<2x384xf32>,
    %cst_13 = arith.constant 5.000000e-01 : f32
    %30 = vector.broadcast %cst_13 : f32 to vector<2x384xf32>
    %31 = arith.mulf %30, %25 : vector<2x384xf32>
    %32 = arith.addf %19, %31 : vector<2x384xf32>
    %c2 = arith.constant 2 : index
    %c0_14 = arith.constant 0 : index
    %33 = vector.load %arg5[%c2, %c0_14] : memref<4x384xf32, #tpu.memory_space<vmem>>, vector<2x384xf32>
    tpu.vector_store %arg5[%c2, %c0_14], %32 {strides = array<i32>} : memref<4x384xf32, #tpu.memory_space<vmem>>, vector<2x384xf32>,
    return
  }
  func.func @transform_0(%arg0: i32) -> (i32, i32) {
    %c0_i32 = arith.constant 0 : i32
    %c0_i32_0 = arith.constant 0 : i32
    return %c0_i32, %arg0 : i32, i32
  }
  func.func @transform_1(%arg0: i32) -> (i32, i32) {
    %c0_i32 = arith.constant 0 : i32
    %c0_i32_0 = arith.constant 0 : i32
    return %c0_i32, %arg0 : i32, i32
  }
  func.func @transform_2(%arg0: i32) -> (i32, i32) {
    %c0_i32 = arith.constant 0 : i32
    %c0_i32_0 = arith.constant 0 : i32
    return %c0_i32, %arg0 : i32, i32
  }
  func.func @transform_3(%arg0: i32) -> (i32, i32) {
    %c0_i32 = arith.constant 0 : i32
    %c0_i32_0 = arith.constant 0 : i32
    return %c0_i32, %arg0 : i32, i32
  }
  func.func @transform_4(%arg0: i32) -> (i32, i32) {
    %c0_i32 = arith.constant 0 : i32
    %c0_i32_0 = arith.constant 0 : i32
    return %c0_i32, %arg0 : i32, i32
  }
}

</mosaic_0001>

<llo_original>
// kernel: ssd_box_head_forward.2
$region0: #{ssd_box_head_forward.2}
  #allocation0 [shape = 'u32[]', space=smem, size = 0x4, offset = 0x4, fixed_abs, tag = 'smem constant byte address 0x4 - core index']
  #allocation1 [shape = 'u32[144,128]{1,0:T(1,128)}', space=vmem, size = 0x12000, scoped, tag = 'internal scratch']
  %s0 = inlined_call_operand.vmem [shape: f32[168,128], index: 0, kind: input, shape index: {}]
  %s1 = inlined_call_operand.vmem [shape: f32[128,256], index: 1, kind: input, shape index: {}]
  %s2 = inlined_call_operand.vmem [shape: f32[1,256], index: 2, kind: input, shape index: {}]
  %s3 = inlined_call_operand.vmem [shape: f32[168,256], index: 3, kind: output, shape index: {}]
  %s4 = sld [smem:[#allocation0]]
  $region22: #{ssd_box_head_forward.2} parent=0
    _
  %s6 = ssub.s32 1, %s4
  %s7 = scalar_select 0, %s6, %s4
  // Predicated region
  $region2: #{ssd_box_head_forward.2} parent=0 // pred_check
    _
  $region3: #{ssd_box_head_forward.2} parent=0 // pred_check_branch
    %9 = sbr.rel (0) target = $region5
  $region4: #{ssd_box_head_forward.2} parent=0 // pred_region
    _
  $region5: #{ssd_box_head_forward.2} parent=0 // pred_fallthru
    _
  // Predicated region
  $region6: #{ssd_box_head_forward.2} parent=0 // pred_check
    _
  $region7: #{ssd_box_head_forward.2} parent=0 // pred_check_branch
    %11 = sbr.rel (0) target = $region9
  $region8: #{ssd_box_head_forward.2} parent=0 // pred_region
    _
  $region9: #{ssd_box_head_forward.2} parent=0 // pred_fallthru
    _
  // Predicated region
  $region10: #{ssd_box_head_forward.2} parent=0 // pred_check
    _
  $region11: #{ssd_box_head_forward.2} parent=0 // pred_check_branch
    %13 = sbr.rel (0) target = $region13
  $region12: #{ssd_box_head_forward.2} parent=0 // pred_region
    _
  $region13: #{ssd_box_head_forward.2} parent=0 // pred_fallthru
    _
  %v14 = vld [vmem:[%s0] sm:$0xff]
  %v15 = vld [vmem:[%s0 + $0x8] sm:$0xff]
  %v16 = vld [vmem:[%s0 + $0x10] sm:$0xff]
  %v17 = vld [vmem:[%s0 + $0x18] sm:$0xff]
  %v18 = vld [vmem:[%s0 + $0x20] sm:$0xff]
  %v19 = vld [vmem:[%s0 + $0x28] sm:$0xff]
  %v20 = vld [vmem:[%s0 + $0x30] sm:$0xff]
  %v21 = vld [vmem:[%s0 + $0x38] sm:$0xff]
  %v22 = vld [vmem:[%s0 + $0x40] sm:$0xff]
  %v23 = vld [vmem:[%s0 + $0x48] sm:$0xff]
  %v24 = vld [vmem:[%s0 + $0x50] sm:$0xff]
  %v25 = vld [vmem:[%s0 + $0x58] sm:$0xff]
  %v26 = vld [vmem:[%s0 + $0x60] sm:$0xff]
  %v27 = vld [vmem:[%s0 + $0x68] sm:$0xff]
  %v28 = vld [vmem:[%s0 + $0x70] sm:$0xff]
  %v29 = vld [vmem:[%s0 + $0x78] sm:$0xff]
  %v30 = vld [vmem:[%s0 + $0x80] sm:$0xff]
  %v31 = vld [vmem:[%s0 + $0x88] sm:$0xff]
  %v32 = vld [vmem:[%s0 + $0x90] sm:$0xff]
  %v33 = vld [vmem:[%s0 + $0x98] sm:$0xff]
  %v34 = vld [vmem:[%s0 + $0xa0] sm:$0xff]
  %v35 = vld [vmem:[%s1] sm:$0xff]
  %v36 = vld [vmem:[%s1 + $0x8] sm:$0xff]
  %v37 = vld [vmem:[%s1 + $0x10] sm:$0xff]
  %v38 = vld [vmem:[%s1 + $0x18] sm:$0xff]
  %v39 = vld [vmem:[%s1 + $0x20] sm:$0xff]
  %v40 = vld [vmem:[%s1 + $0x28] sm:$0xff]
  %v41 = vld [vmem:[%s1 + $0x30] sm:$0xff]
  %v42 = vld [vmem:[%s1 + $0x38] sm:$0xff]
  %v43 = vld [vmem:[%s1 + $0x40] sm:$0xff]
  %v44 = vld [vmem:[%s1 + $0x48] sm:$0xff]
  %v45 = vld [vmem:[%s1 + $0x50] sm:$0xff]
  %v46 = vld [vmem:[%s1 + $0x58] sm:$0xff]
  %v47 = vld [vmem:[%s1 + $0x60] sm:$0xff]
  %v48 = vld [vmem:[%s1 + $0x68] sm:$0xff]
  %v49 = vld [vmem:[%s1 + $0x70] sm:$0xff]
  %v50 = vld [vmem:[%s1 + $0x78] sm:$0xff]
  %v51 = vld [vmem:[%s1 + $0x80] sm:$0xff]
  %v52 = vld [vmem:[%s1 + $0x88] sm:$0xff]
  %v53 = vld [vmem:[%s1 + $0x90] sm:$0xff]
  %v54 = vld [vmem:[%s1 + $0x98] sm:$0xff]
  %v55 = vld [vmem:[%s1 + $0xa0] sm:$0xff]
  %v56 = vld [vmem:[%s1 + $0xa8] sm:$0xff]
  %v57 = vld [vmem:[%s1 + $0xb0] sm:$0xff]
  %v58 = vld [vmem:[%s1 + $0xb8] sm:$0xff]
  %v59 = vld [vmem:[%s1 + $0xc0] sm:$0xff]
  %v60 = vld [vmem:[%s1 + $0xc8] sm:$0xff]
  %v61 = vld [vmem:[%s1 + $0xd0] sm:$0xff]
  %v62 = vld [vmem:[%s1 + $0xd8] sm:$0xff]
  %v63 = vld [vmem:[%s1 + $0xe0] sm:$0xff]
  %v64 = vld [vmem:[%s1 + $0xe8] sm:$0xff]
  %v65 = vld [vmem:[%s1 + $0xf0] sm:$0xff]
  %v66 = vld [vmem:[%s1 + $0xf8] sm:$0xff]
  %v67 = vld [vmem:[%s2] sm:$0x3]
  %v69 = vlaneseq
  %v70 = vshrl.u32 %v69, 7
  %v71 = vsub.s32 0, %v70
  %v72 = vrot.slane %v67, %v71
  %v73 = vlaneseq
  %v74 = vshrl.u32 %v73, 7
  %v75 = vsub.s32 1, %v74
  %v76 = vrot.slane %v67, %v75
  %79 = vmatprep.subr.mxu0 %v66
  %80 = vmatpush1.msra.mxu0 %v65
  %81 = vmatprep.subr.mxu0 %v64
  %82 = vmatpush1.msra.mxu0 %v63
  %83 = vmatprep.subr.mxu0 %v62
  %84 = vmatpush1.msra.mxu0 %v61
  %85 = vmatprep.subr.mxu0 %v60
  %86 = vmatpush1.msra.mxu0 %v59
  %87 = vmatprep.subr.mxu0 %v58
  %88 = vmatpush1.msra.mxu0 %v57
  %89 = vmatprep.subr.mxu0 %v56
  %90 = vmatpush1.msra.mxu0 %v55
  %91 = vmatprep.subr.mxu0 %v54
  %92 = vmatpush1.msra.mxu0 %v53
  %93 = vmatprep.subr.mxu0 %v52
  %94 = vmatpush1.msra.mxu0 %v51
  %95 = vmatprep.subr.mxu0 %v50
  %96 = vmatpush1.msra.mxu0 %v49
  %97 = vmatprep.subr.mxu0 %v48
  %98 = vmatpush1.msra.mxu0 %v47
  %99 = vmatprep.subr.mxu0 %v46
  %100 = vmatpush1.msra.mxu0 %v45
  %101 = vmatprep.subr.mxu0 %v44
  %102 = vmatpush1.msra.mxu0 %v43
  %103 = vmatprep.subr.mxu0 %v42
  %104 = vmatpush1.msra.mxu0 %v41
  %105 = vmatprep.subr.mxu0 %v40
  %106 = vmatpush1.msra.mxu0 %v39
  %107 = vmatprep.subr.mxu0 %v38
  %108 = vmatpush1.msra.mxu0 %v37
  %109 = vmatprep.subr.mxu0 %v36
  %110 = vmatpush1.msra.mxu0 %v35
  %111 = vmatprep.subr.mxu0 0.0
  %112 = vmatpush2.msra.mxu0 0.0
  %113 = vmatprep.subr.mxu0 0.0
  %114 = vmatpush2.msra.mxu0 0.0
  %115 = vmatprep.subr.mxu0 0.0
  %116 = vmatpush2.msra.mxu0 0.0
  %117 = vmatprep.subr.mxu0 0.0
  %118 = vmatpush2.msra.mxu0 0.0
  %119 = vmatprep.subr.mxu0 0.0
  %120 = vmatpush2.msra.mxu0 0.0
  %121 = vmatprep.subr.mxu0 0.0
  %122 = vmatpush2.msra.mxu0 0.0
  %123 = vmatprep.subr.mxu0 0.0
  %124 = vmatpush2.msra.mxu0 0.0
  %125 = vmatprep.subr.mxu0 0.0
  %126 = vmatpush2.msra.mxu0 0.0
  %127 = vmatprep.subr.mxu0 0.0
  %128 = vmatpush2.msra.mxu0 0.0
  %129 = vmatprep.subr.mxu0 0.0
  %130 = vmatpush2.msra.mxu0 0.0
  %131 = vmatprep.subr.mxu0 0.0
  %132 = vmatpush2.msra.mxu0 0.0
  %133 = vmatprep.subr.mxu0 0.0
  %134 = vmatpush2.msra.mxu0 0.0
  %135 = vmatprep.subr.mxu0 0.0
  %136 = vmatpush2.msra.mxu0 0.0
  %137 = vmatprep.subr.mxu0 0.0
  %138 = vmatpush2.msra.mxu0 0.0
  %139 = vmatprep.subr.mxu0 0.0
  %140 = vmatpush2.msra.mxu0 0.0
  %141 = vmatprep.subr.mxu0 0.0
  %142 = vmatpush2.msra.mxu0 0.0
  %143 = vmatprep.mubr.f32.mxu0 0.0
  %144 = vmatmul.mubr.f32.gmra.mxu0 %v14
  %v145 = vpop.f32.mrf.mxu0
  %v146 = vadd.f32 %v72, %v145
  %v147 = vpop.f32.mrf.mxu0
  %v148 = vadd.f32 %v76, %v147
  %149 = vmatprep.mubr.f32.mxu0 0.0
  %150 = vmatmul.mubr.f32.gmra.mxu0 %v15
  %v151 = vpop.f32.mrf.mxu0
  %v152 = vadd.f32 %v72, %v151
  %v153 = vpop.f32.mrf.mxu0
  %v154 = vadd.f32 %v76, %v153
  %155 = vmatprep.mubr.f32.mxu0 0.0
  %156 = vmatmul.mubr.f32.gmra.mxu0 %v16
  %v157 = vpop.f32.mrf.mxu0
  %v158 = vadd.f32 %v72, %v157
  %v159 = vpop.f32.mrf.mxu0
  %v160 = vadd.f32 %v76, %v159
  %161 = vmatprep.mubr.f32.mxu0 0.0
  %162 = vmatmul.mubr.f32.gmra.mxu0 %v17
  %v163 = vpop.f32.mrf.mxu0
  %v164 = vadd.f32 %v72, %v163
  %v165 = vpop.f32.mrf.mxu0
  %v166 = vadd.f32 %v76, %v165
  %167 = vmatprep.mubr.f32.mxu0 0.0
  %168 = vmatmul.mubr.f32.gmra.mxu0 %v18
  %v169 = vpop.f32.mrf.mxu0
  %v170 = vadd.f32 %v72, %v169
  %v171 = vpop.f32.mrf.mxu0
  %v172 = vadd.f32 %v76, %v171
  %173 = vmatprep.mubr.f32.mxu0 0.0
  %174 = vmatmul.mubr.f32.gmra.mxu0 %v19
  %v175 = vpop.f32.mrf.mxu0
  %v176 = vadd.f32 %v72, %v175
  %v177 = vpop.f32.mrf.mxu0
  %v178 = vadd.f32 %v76, %v177
  %179 = vmatprep.mubr.f32.mxu0 0.0
  %180 = vmatmul.mubr.f32.gmra.mxu0 %v20
  %v181 = vpop.f32.mrf.mxu0
  %v182 = vadd.f32 %v72, %v181
  %v183 = vpop.f32.mrf.mxu0
  %v184 = vadd.f32 %v76, %v183
  %185 = vmatprep.mubr.f32.mxu0 0.0
  %186 = vmatmul.mubr.f32.gmra.mxu0 %v21
  %v187 = vpop.f32.mrf.mxu0
  %v188 = vadd.f32 %v72, %v187
  %v189 = vpop.f32.mrf.mxu0
  %v190 = vadd.f32 %v76, %v189
  %191 = vmatprep.mubr.f32.mxu0 0.0
  %192 = vmatmul.mubr.f32.gmra.mxu0 %v22
  %v193 = vpop.f32.mrf.mxu0
  %v194 = vadd.f32 %v72, %v193
  %v195 = vpop.f32.mrf.mxu0
  %v196 = vadd.f32 %v76, %v195
  %197 = vmatprep.mubr.f32.mxu0 0.0
  %198 = vmatmul.mubr.f32.gmra.mxu0 %v23
  %v199 = vpop.f32.mrf.mxu0
  %v200 = vadd.f32 %v72, %v199
  %v201 = vpop.f32.mrf.mxu0
  %v202 = vadd.f32 %v76, %v201
  %203 = vmatprep.mubr.f32.mxu0 0.0
  %204 = vmatmul.mubr.f32.gmra.mxu0 %v24
  %v205 = vpop.f32.mrf.mxu0
  %v206 = vadd.f32 %v72, %v205
  %v207 = vpop.f32.mrf.mxu0
  %v208 = vadd.f32 %v76, %v207
  %209 = vmatprep.mubr.f32.mxu0 0.0
  %210 = vmatmul.mubr.f32.gmra.mxu0 %v25
  %v211 = vpop.f32.mrf.mxu0
  %v212 = vadd.f32 %v72, %v211
  %v213 = vpop.f32.mrf.mxu0
  %v214 = vadd.f32 %v76, %v213
  %215 = vmatprep.mubr.f32.mxu0 0.0
  %216 = vmatmul.mubr.f32.gmra.mxu0 %v26
  %v217 = vpop.f32.mrf.mxu0
  %v218 = vadd.f32 %v72, %v217
  %v219 = vpop.f32.mrf.mxu0
  %v220 = vadd.f32 %v76, %v219
  %221 = vmatprep.mubr.f32.mxu0 0.0
  %222 = vmatmul.mubr.f32.gmra.mxu0 %v27
  %v223 = vpop.f32.mrf.mxu0
  %v224 = vadd.f32 %v72, %v223
  %v225 = vpop.f32.mrf.mxu0
  %v226 = vadd.f32 %v76, %v225
  %227 = vmatprep.mubr.f32.mxu0 0.0
  %228 = vmatmul.mubr.f32.gmra.mxu0 %v28
  %v229 = vpop.f32.mrf.mxu0
  %v230 = vadd.f32 %v72, %v229
  %v231 = vpop.f32.mrf.mxu0
  %v232 = vadd.f32 %v76, %v231
  %233 = vmatprep.mubr.f32.mxu0 0.0
  %234 = vmatmul.mubr.f32.gmra.mxu0 %v29
  %v235 = vpop.f32.mrf.mxu0
  %v236 = vadd.f32 %v72, %v235
  %v237 = vpop.f32.mrf.mxu0
  %v238 = vadd.f32 %v76, %v237
  %239 = vmatprep.mubr.f32.mxu0 0.0
  %240 = vmatmul.mubr.f32.gmra.mxu0 %v30
  %v241 = vpop.f32.mrf.mxu0
  %v242 = vadd.f32 %v72, %v241
  %v243 = vpop.f32.mrf.mxu0
  %v244 = vadd.f32 %v76, %v243
  %245 = vmatprep.mubr.f32.mxu0 0.0
  %246 = vmatmul.mubr.f32.gmra.mxu0 %v31
  %v247 = vpop.f32.mrf.mxu0
  %v248 = vadd.f32 %v72, %v247
  %v249 = vpop.f32.mrf.mxu0
  %v250 = vadd.f32 %v76, %v249
  %251 = vmatprep.mubr.f32.mxu0 0.0
  %252 = vmatmul.mubr.f32.gmra.mxu0 %v32
  %v253 = vpop.f32.mrf.mxu0
  %v254 = vadd.f32 %v72, %v253
  %v255 = vpop.f32.mrf.mxu0
  %v256 = vadd.f32 %v76, %v255
  %257 = vmatprep.mubr.f32.mxu0 0.0
  %258 = vmatmul.mubr.f32.gmra.mxu0 %v33
  %v259 = vpop.f32.mrf.mxu0
  %v260 = vadd.f32 %v72, %v259
  %v261 = vpop.f32.mrf.mxu0
  %v262 = vadd.f32 %v76, %v261
  %263 = vmatprep.mubr.f32.mxu0 0.0
  %264 = vmatmul.mubr.f32.gmra.mxu0 %v34
  %v265 = vpop.f32.mrf.mxu0
  %v266 = vadd.f32 %v72, %v265
  %v267 = vpop.f32.mrf.mxu0
  %v268 = vadd.f32 %v76, %v267
  %269 = vdwg.mxu0
  %270 = vst [vmem:[%s3] sm:$0xff] %v146
  %271 = vst [vmem:[%s3 + $0x8] sm:$0xff] %v148
  %272 = vst [vmem:[%s3 + $0x10] sm:$0xff] %v152
  %273 = vst [vmem:[%s3 + $0x18] sm:$0xff] %v154
  %274 = vst [vmem:[%s3 + $0x20] sm:$0xff] %v158
  %275 = vst [vmem:[%s3 + $0x28] sm:$0xff] %v160
  %276 = vst [vmem:[%s3 + $0x30] sm:$0xff] %v164
  %277 = vst [vmem:[%s3 + $0x38] sm:$0xff] %v166
  %278 = vst [vmem:[%s3 + $0x40] sm:$0xff] %v170
  %279 = vst [vmem:[%s3 + $0x48] sm:$0xff] %v172
  %280 = vst [vmem:[%s3 + $0x50] sm:$0xff] %v176
  %281 = vst [vmem:[%s3 + $0x58] sm:$0xff] %v178
  %282 = vst [vmem:[%s3 + $0x60] sm:$0xff] %v182
  %283 = vst [vmem:[%s3 + $0x68] sm:$0xff] %v184
  %284 = vst [vmem:[%s3 + $0x70] sm:$0xff] %v188
  %285 = vst [vmem:[%s3 + $0x78] sm:$0xff] %v190
  %286 = vst [vmem:[%s3 + $0x80] sm:$0xff] %v194
  %287 = vst [vmem:[%s3 + $0x88] sm:$0xff] %v196
  %288 = vst [vmem:[%s3 + $0x90] sm:$0xff] %v200
  %289 = vst [vmem:[%s3 + $0x98] sm:$0xff] %v202
  %290 = vst [vmem:[%s3 + $0xa0] sm:$0xff] %v206
  %291 = vst [vmem:[%s3 + $0xa8] sm:$0xff] %v208
  %292 = vst [vmem:[%s3 + $0xb0] sm:$0xff] %v212
  %293 = vst [vmem:[%s3 + $0xb8] sm:$0xff] %v214
  %294 = vst [vmem:[%s3 + $0xc0] sm:$0xff] %v218
  %295 = vst [vmem:[%s3 + $0xc8] sm:$0xff] %v220
  %296 = vst [vmem:[%s3 + $0xd0] sm:$0xff] %v224
  %297 = vst [vmem:[%s3 + $0xd8] sm:$0xff] %v226
  %298 = vst [vmem:[%s3 + $0xe0] sm:$0xff] %v230
  %299 = vst [vmem:[%s3 + $0xe8] sm:$0xff] %v232
  %300 = vst [vmem:[%s3 + $0xf0] sm:$0xff] %v236
  %301 = vst [vmem:[%s3 + $0xf8] sm:$0xff] %v238
  %302 = vst [vmem:[%s3 + $0x100] sm:$0xff] %v242
  %303 = vst [vmem:[%s3 + $0x108] sm:$0xff] %v244
  %304 = vst [vmem:[%s3 + $0x110] sm:$0xff] %v248
  %305 = vst [vmem:[%s3 + $0x118] sm:$0xff] %v250
  %306 = vst [vmem:[%s3 + $0x120] sm:$0xff] %v254
  %307 = vst [vmem:[%s3 + $0x128] sm:$0xff] %v256
  %308 = vst [vmem:[%s3 + $0x130] sm:$0xff] %v260
  %309 = vst [vmem:[%s3 + $0x138] sm:$0xff] %v262
  %310 = vst [vmem:[%s3 + $0x140] sm:$0xff] %v266
  %311 = vst [vmem:[%s3 + $0x148] sm:$0xff] %v268
  // Predicated region
  $region14: #{ssd_box_head_forward.2} parent=0 // pred_check
    _
  $region15: #{ssd_box_head_forward.2} parent=0 // pred_check_branch
    %313 = sbr.rel (0) target = $region17
  $region16: #{ssd_box_head_forward.2} parent=0 // pred_region
    _
  $region17: #{ssd_box_head_forward.2} parent=0 // pred_fallthru
    _
  // Predicated region
  $region18: #{ssd_box_head_forward.2} parent=0 // pred_check
    _
  $region19: #{ssd_box_head_forward.2} parent=0 // pred_check_branch
    %315 = sbr.rel (0) target = $region21
  $region20: #{ssd_box_head_forward.2} parent=0 // pred_region
    _
  $region21: #{ssd_box_head_forward.2} parent=0 // pred_fallthru
    _

// kernel: tile.9
$region0: #{tile.9}
  %s0 = inlined_call_operand.vmem [shape: f32[2,368,4], index: 0, kind: input, shape index: {}]
  %s1 = inlined_call_operand.vmem [shape: f32[736,4], index: 1, kind: output, shape index: {}]
  $region1: #{tile.9} parent=0
    #allocation0 [shape = 'u8[24576]{0}', space=vmem, size = 0x6000, scoped, tag = 'scoped mem for output reshape']
    #allocation1 [shape = 'u8[49152]{0}', space=vmem, size = 0xc000, scoped, tag = 'scoped mem for input reshape']
    %s3 = sshll.u32 1, 2
    %s4 = ssub.s32 %s3, 1
    %s5 = smul.addr 2, 11
    %s6 = scalar_lea.vmem %s0, %s5
    %v7 = vld [vmem:[%s6] sm:%s4]
    %s8 = scalar_lea.vmem [#allocation1], 88
    %9 = vst [vmem:[%s8] sm:%s4] %v7
    %s10 = smul.addr 2, 10
    %s11 = scalar_lea.vmem %s0, %s10
    %v12 = vld [vmem:[%s11] sm:%s4]
    %s13 = scalar_lea.vmem [#allocation1], 80
    %14 = vst [vmem:[%s13] sm:%s4] %v12
    %s15 = smul.addr 2, 9
    %s16 = scalar_lea.vmem %s0, %s15
    %v17 = vld [vmem:[%s16] sm:%s4]
    %s18 = scalar_lea.vmem [#allocation1], 72
    %19 = vst [vmem:[%s18] sm:%s4] %v17
    %s20 = smul.addr 2, 8
    %s21 = scalar_lea.vmem %s0, %s20
    %v22 = vld [vmem:[%s21] sm:%s4]
    %s23 = scalar_lea.vmem [#allocation1], 64
    %24 = vst [vmem:[%s23] sm:%s4] %v22
    %s25 = smul.addr 2, 7
    %s26 = scalar_lea.vmem %s0, %s25
    %v27 = vld [vmem:[%s26] sm:%s4]
    %s28 = scalar_lea.vmem [#allocation1], 56
    %29 = vst [vmem:[%s28] sm:%s4] %v27
    %s30 = smul.addr 2, 6
    %s31 = scalar_lea.vmem %s0, %s30
    %v32 = vld [vmem:[%s31] sm:%s4]
    %s33 = scalar_lea.vmem [#allocation1], 48
    %34 = vst [vmem:[%s33] sm:%s4] %v32
    %s35 = smul.addr 2, 5
    %s36 = scalar_lea.vmem %s0, %s35
    %v37 = vld [vmem:[%s36] sm:%s4]
    %s38 = scalar_lea.vmem [#allocation1], 40
    %39 = vst [vmem:[%s38] sm:%s4] %v37
    %s40 = smul.addr 2, 4
    %s41 = scalar_lea.vmem %s0, %s40
    %v42 = vld [vmem:[%s41] sm:%s4]
    %s43 = scalar_lea.vmem [#allocation1], 32
    %44 = vst [vmem:[%s43] sm:%s4] %v42
    %s45 = smul.addr 2, 3
    %s46 = scalar_lea.vmem %s0, %s45
    %v47 = vld [vmem:[%s46] sm:%s4]
    %s48 = scalar_lea.vmem [#allocation1], 24
    %49 = vst [vmem:[%s48] sm:%s4] %v47
    %s50 = smul.addr 2, 2
    %s51 = scalar_lea.vmem %s0, %s50
    %v52 = vld [vmem:[%s51] sm:%s4]
    %s53 = scalar_lea.vmem [#allocation1], 16
    %54 = vst [vmem:[%s53] sm:%s4] %v52
    %s55 = scalar_lea.vmem %s0, 2
    %v56 = vld [vmem:[%s55] sm:%s4]
    %s57 = scalar_lea.vmem [#allocation1], 8
    %58 = vst [vmem:[%s57] sm:%s4] %v56
    %v59 = vld [vmem:[%s0] sm:%s4]
    %60 = vst [vmem:[#allocation1] sm:%s4] %v59
    %s61 = scalar_lea.vmem [#allocation1], 16
    %v62 = vld [vmem:[%s61] ss:$24 sm:$0xf]
    %vm63 = vcmask 916480
    %s64 = scalar_lea.vmem [#allocation0], 16
    %65 = vst.msk [vmem:[%s64] sm:$0xf] %vm63, %v62
    %s66 = smov 3
    %v67 = vld [vmem:[#allocation1] ss:$8 sm:%s66]
    %68 = vst [vmem:[#allocation0] ss:$8 sm:$0x3] %v67
    %s69 = scalar_lea.vmem [#allocation1], 24
    %s70 = smov 3
    %v71 = vld [vmem:[%s69] ss:$8 sm:%s70]
    %s72 = scalar_lea.vmem [#allocation0], 1
    %73 = vst [vmem:[%s72] ss:$8 sm:$0x3] %v71
    %s74 = scalar_lea.vmem [#allocation1], 48
    %s75 = smov 3
    %v76 = vld [vmem:[%s74] ss:$8 sm:%s75]
    %s77 = scalar_lea.vmem [#allocation0], 2
    %78 = vst [vmem:[%s77] ss:$8 sm:$0x3] %v76
    %s79 = scalar_lea.vmem [#allocation1], 72
    %s80 = smov 3
    %v81 = vld [vmem:[%s79] ss:$8 sm:%s80]
    %s82 = scalar_lea.vmem [#allocation0], 3
    %83 = vst [vmem:[%s82] ss:$8 sm:$0x3] %v81
    %s84 = scalar_lea.vmem [#allocation1], 17
    %v85 = vld [vmem:[%s84] ss:$24 sm:$0xf]
    %s86 = scalar_lea.vmem [#allocation1], 17
    %v87 = vld [vmem:[%s86] ss:$24 sm:$0xf]
    %s88 = scalar_lea.vmem [#allocation1], 4294967201
    %v89 = vld [vmem:[%s88] ss:$24 sm:$0xf0]
    %vm90 = vcmask 1047556
    %v91 = vsel %vm90, %v89, %v87
    %vm92 = vcmask 130048
    %v93 = vsel %vm92, %v91, %v85
    %94 = vrot.lane.b32.xlu0 %v93, 112
    %v95 = vpop.permute.xlu0 %94
    %vm96 = vcmask 785408
    %s97 = scalar_lea.vmem [#allocation0], 40
    %98 = vst.msk [vmem:[%s97] sm:$0xf] %vm96, %v95
    %vm99 = vcmask 1048448
    %s100 = scalar_lea.vmem [#allocation0], 32
    %101 = vst.msk [vmem:[%s100] sm:$0xf] %vm99, %v95
    %s102 = scalar_lea.vmem [#allocation0], 12
    %103 = vst.msk [vmem:[%s102] sm:$0xf0] %vm99, %v95
    %s104 = scalar_lea.vmem [#allocation1], 9
    %v105 = vld [vmem:[%s104] ss:$24 sm:$0xf]
    %s106 = scalar_lea.vmem [#allocation1], 4294967201
    %v107 = vld [vmem:[%s106] ss:$24 sm:$0xf0]
    %vm108 = vcmask 1047556
    %v109 = vsel %vm108, %v107, %v105
    %s110 = scalar_lea.vmem [#allocation1], 9
    %v111 = vld [vmem:[%s110] ss:$24 sm:$0xf]
    %vm112 = vcmask 130048
    %v113 = vsel %vm112, %v111, %v109
    %114 = vrot.lane.b32.xlu0 %v113, 112
    %v115 = vpop.permute.xlu0 %114
    %vm116 = vcmask 916480
    %s117 = scalar_lea.vmem [#allocation0], 32
    %118 = vst.msk [vmem:[%s117] sm:$0xf] %vm116, %v115
    %s119 = scalar_lea.vmem [#allocation0], 20
    %120 = vst.msk [vmem:[%s119] sm:$0xf0] %vm116, %v115
    %vm121 = vcmask 1048448
    %s122 = scalar_lea.vmem [#allocation0], 24
    %123 = vst.msk [vmem:[%s122] sm:$0xf] %vm121, %v115
    %s125 = sshll.u32 1, 4
    %s126 = ssub.s32 %s125, 1
    %v128 = vld [vmem:[#allocation0] sm:%s126]
    %s129 = sshll.u32 1, 4
    %s130 = ssub.s32 %s129, 1
    %131 = vst [vmem:[%s1] sm:%s130] %v128
    %s132 = scalar_lea.vmem [#allocation0], 8
    %v133 = vld [vmem:[%s132] sm:%s126]
    %s134 = sshll.u32 1, 4
    %s135 = ssub.s32 %s134, 1
    %s136 = scalar_lea.vmem %s1, 4
    %137 = vst [vmem:[%s136] sm:%s135] %v133
    %s138 = scalar_lea.vmem [#allocation0], 16
    %v139 = vld [vmem:[%s138] sm:%s126]
    %s140 = sshll.u32 1, 4
    %s141 = ssub.s32 %s140, 1
    %s142 = smul.addr 4, 2
    %s143 = scalar_lea.vmem %s1, %s142
    %144 = vst [vmem:[%s143] sm:%s141] %v139
    %s145 = scalar_lea.vmem [#allocation0], 24
    %v146 = vld [vmem:[%s145] sm:%s126]
    %s147 = sshll.u32 1, 4
    %s148 = ssub.s32 %s147, 1
    %s149 = smul.addr 4, 3
    %s150 = scalar_lea.vmem %s1, %s149
    %151 = vst [vmem:[%s150] sm:%s148] %v146
    %s152 = scalar_lea.vmem [#allocation0], 32
    %v153 = vld [vmem:[%s152] sm:%s126]
    %s154 = sshll.u32 1, 4
    %s155 = ssub.s32 %s154, 1
    %s156 = smul.addr 4, 4
    %s157 = scalar_lea.vmem %s1, %s156
    %158 = vst [vmem:[%s157] sm:%s155] %v153
    %s159 = scalar_lea.vmem [#allocation0], 40
    %v160 = vld [vmem:[%s159] sm:%s126]
    %s161 = sshll.u32 1, 4
    %s162 = ssub.s32 %s161, 1
    %s163 = smul.addr 4, 5
    %s164 = scalar_lea.vmem %s1, %s163
    %165 = vst [vmem:[%s164] sm:%s162] %v160

// kernel: ssd_box_head_forward.3
$region0: #{ssd_box_head_forward.3}
  #allocation0 [shape = 'u32[]', space=smem, size = 0x4, offset = 0x4, fixed_abs, tag = 'smem constant byte address 0x4 - core index']
  #allocation1 [shape = 'u32[144,128]{1,0:T(1,128)}', space=vmem, size = 0x12000, scoped, tag = 'internal scratch']
  %s0 = inlined_call_operand.vmem [shape: f32[6,768], index: 0, kind: input, shape index: {}]
  %s1 = inlined_call_operand.vmem [shape: f32[4,768], index: 1, kind: input, shape index: {}]
  %s2 = inlined_call_operand.vmem [shape: f32[4,768], index: 2, kind: input, shape index: {}]
  %s3 = inlined_call_operand.vmem [shape: f32[6,768], index: 3, kind: output, shape index: {0}]
  %s4 = inlined_call_operand.vmem [shape: f32[4,768], index: 4, kind: output, shape index: {1}]
  %5 = xla_tuple %s3, %s4
  %s6 = sld [smem:[#allocation0]]
  $region53: #{ssd_box_head_forward.3} parent=0
    _
  %s8 = ssub.s32 1, %s6
  %s9 = scalar_select 0, %s8, %s6
  loop: start=0, step=1, limit=4
  $region2: #{ssd_box_head_forward.3} parent=0 // loop_pre_header
    _
  $region3: #{ssd_box_head_forward.3} parent=0 // loop_header
    %s11 = sphi 0, %s15
    %p12 = scmp.ge.s32.totalorder %s11, 4
    %s21 = sphi 0, %s23
    %s24 = sphi 0, %s21
    %s25 = sphi 0, %s24
    %s41 = sphi 0, %s25
    %s47 = sphi 0, %s49
    %s50 = sphi 0, %s47
    %s51 = sphi 0, %s50
    %s67 = sphi 0, %s51
    %s73 = sphi 0, %s75
    %s76 = sphi 0, %s73
    %s77 = sphi 0, %s76
    %s93 = sphi 0, %s77
    %s99 = sphi 0, %s101
    %s102 = sphi 0, %s99
    %s103 = sphi 0, %s102
    %s119 = sphi 0, %s103
    %s125 = sphi 0, %s127
    %s128 = sphi 0, %s125
    %s129 = sphi 0, %s128
    %s145 = sphi 0, %s129
  $region4: #{ssd_box_head_forward.3} parent=0 // loop_header_branch
    %14 = sbr.rel (%p12) target = $region8
  $region5: #{ssd_box_head_forward.3} parent=0 // loop_body
    %s16 = ssub.s32 %s11, 1
    %s17 = ssub.s32 %s11, 2
    %s18 = sadd.s32 %s11, 1
    %s19 = ssub.s32 %s11, %s18
    %p20 = scmp.eq.s32.totalorder %s19, 0
    %s22 = sadd.s32 %s21, 1
    %s23 = scalar_select %p20, %s21, %s22
    %p26 = pneg %p20
    %p27 = scmp.eq.s32.totalorder %s11, 1
    %p28 = por %p26, %p27
    %p29 = scmp.ne.s32.totalorder %s21, %s24
    %p30 = scmp.eq.s32.totalorder %s11, 0
    %p31 = por %p29, %p30
    %p32 = scmp.ne.s32.totalorder %s21, %s24
    %p33 = scmp.eq.s32.totalorder %s16, 1
    %p34 = por %p32, %p33
    %p35 = scmp.ne.s32.totalorder %s24, %s25
    %p36 = scmp.eq.s32.totalorder %s16, 0
    %p37 = por %p35, %p36
    %p38 = scmp.ne.s32.totalorder %s24, %s25
    %p39 = scmp.eq.s32.totalorder %s17, 1
    %p40 = por %p38, %p39
    %p42 = scmp.ne.s32.totalorder %s25, %s41
    %p43 = scmp.eq.s32.totalorder %s17, 0
    %p44 = por %p42, %p43
    %s45 = ssub.s32 %s11, %s18
    %p46 = scmp.eq.s32.totalorder %s45, 0
    %s48 = sadd.s32 %s47, 1
    %s49 = scalar_select %p46, %s47, %s48
    %p52 = pneg %p46
    %p53 = scmp.eq.s32.totalorder %s11, 1
    %p54 = por %p52, %p53
    %p55 = scmp.ne.s32.totalorder %s47, %s50
    %p56 = scmp.eq.s32.totalorder %s11, 0
    %p57 = por %p55, %p56
    %p58 = scmp.ne.s32.totalorder %s47, %s50
    %p59 = scmp.eq.s32.totalorder %s16, 1
    %p60 = por %p58, %p59
    %p61 = scmp.ne.s32.totalorder %s50, %s51
    %p62 = scmp.eq.s32.totalorder %s16, 0
    %p63 = por %p61, %p62
    %p64 = scmp.ne.s32.totalorder %s50, %s51
    %p65 = scmp.eq.s32.totalorder %s17, 1
    %p66 = por %p64, %p65
    %p68 = scmp.ne.s32.totalorder %s51, %s67
    %p69 = scmp.eq.s32.totalorder %s17, 0
    %p70 = por %p68, %p69
    %s71 = ssub.s32 %s11, %s18
    %p72 = scmp.eq.s32.totalorder %s71, 0
    %s74 = sadd.s32 %s73, 1
    %s75 = scalar_select %p72, %s73, %s74
    %p78 = pneg %p72
    %p79 = scmp.eq.s32.totalorder %s11, 1
    %p80 = por %p78, %p79
    %p81 = scmp.ne.s32.totalorder %s73, %s76
    %p82 = scmp.eq.s32.totalorder %s11, 0
    %p83 = por %p81, %p82
    %p84 = scmp.ne.s32.totalorder %s73, %s76
    %p85 = scmp.eq.s32.totalorder %s16, 1
    %p86 = por %p84, %p85
    %p87 = scmp.ne.s32.totalorder %s76, %s77
    %p88 = scmp.eq.s32.totalorder %s16, 0
    %p89 = por %p87, %p88
    %p90 = scmp.ne.s32.totalorder %s76, %s77
    %p91 = scmp.eq.s32.totalorder %s17, 1
    %p92 = por %p90, %p91
    %p94 = scmp.ne.s32.totalorder %s77, %s93
    %p95 = scmp.eq.s32.totalorder %s17, 0
    %p96 = por %p94, %p95
    %s97 = ssub.s32 %s11, %s18
    %p98 = scmp.eq.s32.totalorder %s97, 0
    %s100 = sadd.s32 %s99, 1
    %s101 = scalar_select %p98, %s99, %s100
    %p104 = pneg %p98
    %p105 = scmp.eq.s32.totalorder %s11, 1
    %p106 = por %p104, %p105
    %p107 = scmp.ne.s32.totalorder %s99, %s102
    %p108 = scmp.eq.s32.totalorder %s11, 0
    %p109 = por %p107, %p108
    %p110 = scmp.ne.s32.totalorder %s99, %s102
    %p111 = scmp.eq.s32.totalorder %s16, 1
    %p112 = por %p110, %p111
    %p113 = scmp.ne.s32.totalorder %s102, %s103
    %p114 = scmp.eq.s32.totalorder %s16, 0
    %p115 = por %p113, %p114
    %p116 = scmp.ne.s32.totalorder %s102, %s103
    %p117 = scmp.eq.s32.totalorder %s17, 1
    %p118 = por %p116, %p117
    %p120 = scmp.ne.s32.totalorder %s103, %s119
    %p121 = scmp.eq.s32.totalorder %s17, 0
    %p122 = por %p120, %p121
    %s123 = ssub.s32 %s11, %s18
    %p124 = scmp.eq.s32.totalorder %s123, 0
    %s126 = sadd.s32 %s125, 1
    %s127 = scalar_select %p124, %s125, %s126
    %p130 = pneg %p124
    %p131 = scmp.eq.s32.totalorder %s11, 1
    %p132 = por %p130, %p131
    %p133 = scmp.ne.s32.totalorder %s125, %s128
    %p134 = scmp.eq.s32.totalorder %s11, 0
    %p135 = por %p133, %p134
    %p136 = scmp.ne.s32.totalorder %s125, %s128
    %p137 = scmp.eq.s32.totalorder %s16, 1
    %p138 = por %p136, %p137
    %p139 = scmp.ne.s32.totalorder %s128, %s129
    %p140 = scmp.eq.s32.totalorder %s16, 0
    %p141 = por %p139, %p140
    %p142 = scmp.ne.s32.totalorder %s128, %s129
    %p143 = scmp.eq.s32.totalorder %s17, 1
    %p144 = por %p142, %p143
    %p146 = scmp.ne.s32.totalorder %s129, %s145
    %p147 = scmp.eq.s32.totalorder %s17, 0
    %p148 = por %p146, %p147
    %p149 = scmp.le.s32.totalorder 1, %s11
    %p150 = scmp.lt.s32.totalorder %s11, 3
    %p151 = pnand %p149, %p150
    %p152 = pneg %p151
    // Predicated region
    $region9: #{ssd_box_head_forward.3} parent=5 // pred_check
      _
    $region10: #{ssd_box_head_forward.3} parent=5 // pred_check_branch
      %154 = sbr.rel (%p151) target = $region12
    $region11: #{ssd_box_head_forward.3} parent=5 // pred_region
      %s155 = ssub.s32 %s11, 1
    $region12: #{ssd_box_head_forward.3} parent=5 // pred_fallthru
      _
    %p156 = scmp.lt.s32.totalorder %s11, 2
    // Predicated region
    $region13: #{ssd_box_head_forward.3} parent=5 // pred_check
      %p157 = pneg %p156
    $region14: #{ssd_box_head_forward.3} parent=5 // pred_check_branch
      %159 = sbr.rel (%p157) target = $region16
    $region15: #{ssd_box_head_forward.3} parent=5 // pred_region
      // Predicated region
      $region17: #{ssd_box_head_forward.3} parent=15 // pred_check
        %p160 = pneg %p31
      $region18: #{ssd_box_head_forward.3} parent=15 // pred_check_branch
        %162 = sbr.rel (%p160) target = $region20
      $region19: #{ssd_box_head_forward.3} parent=15 // pred_region
        %s163 = smul.u32 3, %s11
        %p164 = scmp.lt.s32.totalorder %s163, 5
        %s165 = scalar_select %p164, %s163, 5
        %s166 = smul.addr %s165, 8
        %s167 = scalar_lea.vmem %s0, %s166
        %s168 = smul.u32 3, %s11
      $region20: #{ssd_box_head_forward.3} parent=15 // pred_fallthru
        _
      // Predicated region
      $region21: #{ssd_box_head_forward.3} parent=15 // pred_check
        %p169 = pneg %p57
      $region22: #{ssd_box_head_forward.3} parent=15 // pred_check_branch
        %171 = sbr.rel (%p169) target = $region24
      $region23: #{ssd_box_head_forward.3} parent=15 // pred_region
        %s172 = smul.u32 3, %s11
        %p173 = scmp.lt.s32.totalorder %s172, 5
        %s174 = scalar_select %p173, %s172, 5
        %s175 = smul.addr %s174, 4
        %s176 = scalar_lea.vmem %s1, %s175
        %s177 = smul.u32 3, %s11
      $region24: #{ssd_box_head_forward.3} parent=15 // pred_fallthru
        _
      // Predicated region
      $region25: #{ssd_box_head_forward.3} parent=15 // pred_check
        %p178 = pneg %p83
      $region26: #{ssd_box_head_forward.3} parent=15 // pred_check_branch
        %180 = sbr.rel (%p178) target = $region28
      $region27: #{ssd_box_head_forward.3} parent=15 // pred_region
        %s181 = smul.u32 3, %s11
        %p182 = scmp.lt.s32.totalorder %s181, 5
        %s183 = scalar_select %p182, %s181, 5
        %s184 = smul.addr %s183, 4
        %s185 = scalar_lea.vmem %s2, %s184
        %s186 = smul.u32 3, %s11
      $region28: #{ssd_box_head_forward.3} parent=15 // pred_fallthru
        _
    $region16: #{ssd_box_head_forward.3} parent=5 // pred_fallthru
      _
    %p187 = scmp.le.s32.totalorder 1, %s11
    %p188 = scmp.lt.s32.totalorder %s11, 3
    %p189 = pnand %p187, %p188
    %p190 = pneg %p189
    // Predicated region
    $region29: #{ssd_box_head_forward.3} parent=5 // pred_check
      _
    $region30: #{ssd_box_head_forward.3} parent=5 // pred_check_branch
      %192 = sbr.rel (%p189) target = $region32
    $region31: #{ssd_box_head_forward.3} parent=5 // pred_region
      %s193 = ssub.s32 %s11, 1
      %s194 = smul.u32 3, %s16
      %p195 = scmp.lt.s32.totalorder %s194, 5
      %s196 = scalar_select %p195, %s194, 5
      %s197 = smul.addr %s196, 8
      %s198 = scalar_lea.vmem %s0, %s197
      %p199 = pneg %p37
      %p200 = pneg %p34
      %s201 = smul.u32 3, %s16
      %p202 = scmp.lt.s32.totalorder %s201, 5
      %s203 = scalar_select %p202, %s201, 5
      %s204 = smul.addr %s203, 4
      %s205 = scalar_lea.vmem %s1, %s204
      %p206 = pneg %p63
      %p207 = pneg %p60
      %s208 = smul.u32 3, %s16
      %p209 = scmp.lt.s32.totalorder %s208, 5
      %s210 = scalar_select %p209, %s208, 5
      %s211 = smul.addr %s210, 4
      %s212 = scalar_lea.vmem %s2, %s211
      %p213 = pneg %p89
      %p214 = pneg %p86
      %p215 = pneg %p115
      %p216 = pneg %p112
      %s217 = smul.u32 3, %s16
      %p218 = scmp.lt.s32.totalorder %s217, 5
      %s219 = scalar_select %p218, %s217, 5
      %s220 = smul.addr %s219, 8
      %s221 = scalar_lea.vmem %s3, %s220
      %p222 = pneg %p141
      %p223 = pneg %p138
      %s224 = smul.u32 3, %s16
      %p225 = scmp.lt.s32.totalorder %s224, 5
      %s226 = scalar_select %p225, %s224, 5
      %s227 = smul.addr %s226, 4
      %s228 = scalar_lea.vmem %s4, %s227
      %s229 = smul.u32 3, %s16
      %p230 = scmp.lt.s32.totalorder %s229, 5
      %s231 = scalar_select %p230, %s229, 5
      %s232 = smul.addr %s231, 8
      %s233 = scalar_lea.vmem %s0, %s232
      %s234 = smul.u32 3, %s16
      %s235 = smul.u32 3, %s16
      %p236 = scmp.lt.s32.totalorder %s235, 5
      %s237 = scalar_select %p236, %s235, 5
      %s238 = smul.addr %s237, 4
      %s239 = scalar_lea.vmem %s1, %s238
      %s240 = smul.u32 3, %s16
      %s241 = smul.u32 3, %s16
      %p242 = scmp.lt.s32.totalorder %s241, 5
      %s243 = scalar_select %p242, %s241, 5
      %s244 = smul.addr %s243, 4
      %s245 = scalar_lea.vmem %s2, %s244
      %s246 = smul.u32 3, %s16
      %s247 = smul.u32 3, %s16
      %p248 = scmp.lt.s32.totalorder %s247, 5
      %s249 = scalar_select %p248, %s247, 5
      %s250 = smul.addr %s249, 8
      %s251 = scalar_lea.vmem %s3, %s250
      %s252 = smul.u32 3, %s16
      %s253 = smul.u32 3, %s16
      %p254 = scmp.lt.s32.totalorder %s253, 5
      %s255 = scalar_select %p254, %s253, 5
      %s256 = smul.addr %s255, 4
      %s257 = scalar_lea.vmem %s4, %s256
      %s258 = smul.u32 3, %s16
      %v259 = vld [vmem:[%s233] sm:$0x3f]
      %v260 = vld [vmem:[%s233 + $0x8] sm:$0x3f]
      %v261 = vld [vmem:[%s233 + $0x10] sm:$0x3f]
      %vm262 = vcmask 1045504
      %v263 = vsel %vm262, %v259, -inf
      %v264 = vrot.slane %v263, 4
      %v265 = vmax.f32 %v263, %v264
      %v266 = vrot.slane %v265, 2
      %v267 = vmax.f32 %v265, %v266
      %v268 = vrot.slane %v267, 1
      %v269 = vmax.f32 %v267, %v268
      %v270 = vsel %vm262, %v260, -inf
      %v271 = vrot.slane %v270, 4
      %v272 = vmax.f32 %v270, %v271
      %v273 = vrot.slane %v272, 2
      %v274 = vmax.f32 %v272, %v273
      %v275 = vrot.slane %v274, 1
      %v276 = vmax.f32 %v274, %v275
      %v277 = vsel %vm262, %v261, -inf
      %v278 = vrot.slane %v277, 4
      %v279 = vmax.f32 %v277, %v278
      %v280 = vrot.slane %v279, 2
      %v281 = vmax.f32 %v279, %v280
      %v282 = vrot.slane %v281, 1
      %v283 = vmax.f32 %v281, %v282
      %v284 = vsub.f32 %v259, %v269
      %v285 = vsub.f32 %v260, %v276
      %v286 = vsub.f32 %v261, %v283
      %v287 = vmul.f32 %v284, 1.442695
      %v288 = vpow.pop %v287
      %v289 = vmul.f32 %v285, 1.442695
      %v290 = vpow.pop %v289
      %v291 = vmul.f32 %v286, 1.442695
      %v292 = vpow.pop %v291
      %v293 = vsel %vm262, %v288, 0.0
      %v294 = vrot.slane %v293, 4
      %v295 = vadd.f32 %v293, %v294
      %v296 = vrot.slane %v295, 2
      %v297 = vadd.f32 %v295, %v296
      %v298 = vrot.slane %v297, 1
      %v299 = vadd.f32 %v297, %v298
      %v300 = vsel %vm262, %v290, 0.0
      %v301 = vrot.slane %v300, 4
      %v302 = vadd.f32 %v300, %v301
      %v303 = vrot.slane %v302, 2
      %v304 = vadd.f32 %v302, %v303
      %v305 = vrot.slane %v304, 1
      %v306 = vadd.f32 %v304, %v305
      %v307 = vsel %vm262, %v292, 0.0
      %v308 = vrot.slane %v307, 4
      %v309 = vadd.f32 %v307, %v308
      %v310 = vrot.slane %v309, 2
      %v311 = vadd.f32 %v309, %v310
      %v312 = vrot.slane %v311, 1
      %v313 = vadd.f32 %v311, %v312
      %v314 = vrcp.pop %v299
      %v315 = vmul.f32 %v288, %v314
      %v316 = vrcp.pop %v306
      %v317 = vmul.f32 %v290, %v316
      %v318 = vrcp.pop %v313
      %v319 = vmul.f32 %v292, %v318
      %320 = vst [vmem:[%s251] sm:$0x3f] %v315
      %321 = vst [vmem:[%s251 + $0x8] sm:$0x3f] %v317
      %322 = vst [vmem:[%s251 + $0x10] sm:$0x3f] %v319
      %v323 = vld [vmem:[%s239] sm:$0xff]
      %v324 = vld [vmem:[%s239 + $0x8] sm:$0xf]
      %v325 = vld [vmem:[%s245] sm:$0xff]
      %v326 = vld [vmem:[%s245 + $0x8] sm:$0xf]
      %v327 = vmul.f32 %v323, 0.1
      %v328 = vmul.f32 %v324, 0.1
      %v331 = vrot.slane %v325, 6
      %v332 = vrot.slane %v331, 4
      %v333 = vrot.slane %v326, 6
      %v334 = vrot.slane %v333, 4
      %v337 = vmul.f32 %v327, %v332
      %v338 = vmul.f32 %v328, %v334
      %v339 = vadd.f32 %v337, %v325
      %v340 = vadd.f32 %v338, %v326
      %v341 = vmul.f32 %v323, 0.2
      %v342 = vmul.f32 %v324, 0.2
      %v343 = vmul.f32 %v341, 1.442695
      %v344 = vpow.pop %v343
      %v345 = vmul.f32 %v342, 1.442695
      %v346 = vpow.pop %v345
      %v347 = vmul.f32 %v344, %v325
      %v348 = vmul.f32 %v346, %v326
      %v349 = vmul.f32 %v347, 0.5
      %v350 = vmul.f32 %v348, 0.5
      %v353 = vrot.slane %v349, 6
      %v354 = vrot.slane %v353, 4
      %v355 = vrot.slane %v350, 6
      %v356 = vrot.slane %v355, 4
      %v359 = vsub.f32 %v339, %v354
      %v360 = vsub.f32 %v340, %v356
      %361 = vst [vmem:[%s257] sm:$0x33] %v359
      %362 = vst [vmem:[%s257 + $0x8] sm:$0x3] %v360
      %v363 = vadd.f32 %v339, %v354
      %v364 = vadd.f32 %v340, %v356
      %v367 = vrot.slane %v363, 6
      %v368 = vrot.slane %v364, 6
      %371 = vst [vmem:[%s257] sm:$0xcc] %v367
      %372 = vst [vmem:[%s257 + $0x8] sm:$0xc] %v368
      %s373 = smul.u32 3, %s16
      %p374 = scmp.lt.s32.totalorder %s373, 5
      %s375 = scalar_select %p374, %s373, 5
      %s376 = smul.addr %s375, 8
      %s377 = scalar_lea.vmem %s3, %s376
      %s378 = smul.u32 3, %s16
      %p379 = scmp.lt.s32.totalorder %s378, 5
      %s380 = scalar_select %p379, %s378, 5
      %s381 = smul.addr %s380, 4
      %s382 = scalar_lea.vmem %s4, %s381
      // Predicated region
      $region33: #{ssd_box_head_forward.3} parent=31 // pred_check
        %p383 = pneg %p112
      $region34: #{ssd_box_head_forward.3} parent=31 // pred_check_branch
        %385 = sbr.rel (%p383) target = $region36
      $region35: #{ssd_box_head_forward.3} parent=31 // pred_region
        %s386 = smul.u32 3, %s16
      $region36: #{ssd_box_head_forward.3} parent=31 // pred_fallthru
        _
      // Predicated region
      $region37: #{ssd_box_head_forward.3} parent=31 // pred_check
        %p387 = pneg %p138
      $region38: #{ssd_box_head_forward.3} parent=31 // pred_check_branch
        %389 = sbr.rel (%p387) target = $region40
      $region39: #{ssd_box_head_forward.3} parent=31 // pred_region
        %s390 = smul.u32 3, %s16
      $region40: #{ssd_box_head_forward.3} parent=31 // pred_fallthru
        _
    $region32: #{ssd_box_head_forward.3} parent=5 // pred_fallthru
      _
    %p391 = scmp.le.s32.totalorder 2, %s11
    // Predicated region
    $region41: #{ssd_box_head_forward.3} parent=5 // pred_check
      %p392 = pneg %p391
    $region42: #{ssd_box_head_forward.3} parent=5 // pred_check_branch
      %394 = sbr.rel (%p392) target = $region44
    $region43: #{ssd_box_head_forward.3} parent=5 // pred_region
      %s395 = ssub.s32 %s11, 2
      // Predicated region
      $region45: #{ssd_box_head_forward.3} parent=43 // pred_check
        %p396 = pneg %p118
      $region46: #{ssd_box_head_forward.3} parent=43 // pred_check_branch
        %398 = sbr.rel (%p396) target = $region48
      $region47: #{ssd_box_head_forward.3} parent=43 // pred_region
        %s399 = smul.u32 3, %s17
        %p400 = scmp.lt.s32.totalorder %s399, 5
        %s401 = scalar_select %p400, %s399, 5
        %s402 = smul.addr %s401, 8
        %s403 = scalar_lea.vmem %s3, %s402
      $region48: #{ssd_box_head_forward.3} parent=43 // pred_fallthru
        _
      // Predicated region
      $region49: #{ssd_box_head_forward.3} parent=43 // pred_check
        %p404 = pneg %p144
      $region50: #{ssd_box_head_forward.3} parent=43 // pred_check_branch
        %406 = sbr.rel (%p404) target = $region52
      $region51: #{ssd_box_head_forward.3} parent=43 // pred_region
        %s407 = smul.u32 3, %s17
        %p408 = scmp.lt.s32.totalorder %s407, 5
        %s409 = scalar_select %p408, %s407, 5
        %s410 = smul.addr %s409, 4
        %s411 = scalar_lea.vmem %s4, %s410
      $region52: #{ssd_box_head_forward.3} parent=43 // pred_fallthru
        _
    $region44: #{ssd_box_head_forward.3} parent=5 // pred_fallthru
      _
  $region6: #{ssd_box_head_forward.3} parent=0 // loop_footer
    %s15 = sadd.s32 1, %s11
  $region7: #{ssd_box_head_forward.3} parent=0 // loop_footer_branch
    %10 = sbr.rel target = $region3
  $region8: #{ssd_box_head_forward.3} parent=0 // loop_exit
    _

</llo_original>
